<compile_context>
chip_gen: v7x
topology: tpu7x:2x2x1
jax: 0.10.0
libtpu: 0.0.40
codegen_flags: <defaults>
</compile_context>

<pallas_src>
import functools

import jax
import jax.numpy as jnp
from jax.experimental import pallas as pl
from jax.experimental.pallas import tpu as pltpu


# ----------------------------------------------------------------------------
# Kernel
# ----------------------------------------------------------------------------
def _downsample_kernel(x_ref, halo_ref, w_ref, b_ref, o_ref, *, fuse_taps):
    """3x3 / stride-2 conv on parity-de-interleaved slabs.

    x_ref   : (4, TH, Wh, Cin) bf16, x_ref[2p+q, i, j, :] == x_pad[2(i0+i)+p, 2j+q, :]
    halo_ref: (2, Wh, Cin)     bf16, tile-local row TH of the p == 0 slabs
    w_ref   : (9*Cin, Cout)    bf16, row block t = 3*kh+kw holds w[kh, kw, :, :]
    b_ref   : (1, Cout)        f32
    o_ref   : (TH*Wo, Cout)
    """
    _, th, wh, cin = x_ref.shape
    wo = wh - 1

    # Shifted even-H-parity slabs (tile-local rows 1..TH) used by the kh == 2
    # taps; the last row comes from the tiny per-tile halo block.  This is a
    # VMEM-local concat -- the old wrapper-side halo stack (a full extra HBM
    # read+write of the activation) no longer exists.
    def shifted(q):
        last = halo_ref[q:q + 1, :, :]                       # (1, Wh, Cin)
        if th == 1:
            return last
        return jnp.concatenate([x_ref[q, 1:, :, :], last], axis=0)

    sh = [shifted(0), shifted(1)]

    def tap(kh, kw):                                          # -> (TH, Wo, Cin)
        p, i0 = kh % 2, kh // 2
        q, j0 = kw % 2, kw // 2
        if i0 == 0:
            return x_ref[2 * p + q, :, j0:j0 + wo, :]
        return sh[q][:, j0:j0 + wo, :]

    if fuse_taps:
        # Small-C path: in-kernel im2col (lane concat of the 9 taps) -> one
        # lane-dense K = 9*Cin MXU matmul.  No wrapper patch materialization.
        xcol = jnp.concatenate(
            [tap(kh, kw) for kh in range(3) for kw in range(3)], axis=-1)
        acc = jnp.dot(xcol.reshape(th * wo, 9 * cin), w_ref[...],
                      preferred_element_type=jnp.float32)
    else:
        # Large-C path: 9 per-tap MXU matmuls accumulated in f32 values
        # (vregs / MXU results); no VMEM-scratch round-trip, single store.
        acc = None
        for kh in range(3):
            for kw in range(3):
                t = 3 * kh + kw
                d = jnp.dot(tap(kh, kw).reshape(th * wo, cin),
                            w_ref[t * cin:(t + 1) * cin, :],
                            preferred_element_type=jnp.float32)
                acc = d if acc is None else acc + d

    o_ref[...] = (acc + b_ref[...]).astype(o_ref.dtype)


# ----------------------------------------------------------------------------
# Tile / VMEM sizing
# ----------------------------------------------------------------------------
def _vmem_budget_and_limit():
    """Per-generation VMEM sizing: large tiles on v5e/v6e (128 MiB physical),
    conservative on v7x-class parts (64 MiB per core)."""
    try:
        cap = int(pltpu.get_tpu_info().vmem_capacity_bytes)
    except Exception:                       # off-device / older jax: be safe
        cap = 64 << 20
    if cap >= (96 << 20):                   # v5e / v6e
        return 48 << 20, 100 << 20
    return 20 << 20, 48 << 20               # v7x-class


def _pick_tile_rows(ho, wo, cin, cout, out_itemsize, fuse_taps, budget_bytes,
                    want_multi_tile):
    """Largest TH dividing Ho whose double-buffered working set fits the VMEM
    budget.  When `want_multi_tile` (single image, targets v7x's 2 TCs),
    prefer TH <= Ho/2 so the parallel grid has >= 2 steps."""
    wh = wo + 1

    def cost(th):
        in_blk = 4 * th * wh * cin * 2 + 2 * wh * cin * 2     # bf16 slabs + halo
        w_blk = 9 * cin * cout * 2 + cout * 4                 # weights + bias
        out_blk = th * wo * cout * out_itemsize
        if fuse_taps:
            live = th * wo * 9 * cin * 2 + th * wo * cout * 4  # xcol + f32 acc
        else:
            live = (2 * th * wh * cin * 2                      # shifted slabs
                    + th * wo * cin * 2                        # one flattened tap
                    + 2 * th * wo * cout * 4)                  # acc + dot result
        return 2 * (in_blk + w_blk + out_blk) + live + (1 << 16)

    divisors = [d for d in range(1, ho + 1)
                if ho % d == 0 and (d == ho or (d * wo) % 8 == 0)]

    def best(cands):
        fit = [d for d in cands if cost(d) <= budget_bytes]
        return max(fit) if fit else None

    if want_multi_tile:
        th = best([d for d in divisors if d <= ho // 2])
        if th is not None:
            return th
    th = best(divisors)
    return th if th is not None else min(divisors)


# ----------------------------------------------------------------------------
# Wrappers
# ----------------------------------------------------------------------------
def downsample_nhwc(x, w_oihw, b, *, tile_rows=None, fuse_taps=None):
    """Conv2d(Cin->Cout, kernel 3x3, stride 2, padding 1), NHWC in / NHWC out."""
    n, h, w_sp, cin = x.shape
    cout = w_oihw.shape[0]
    assert w_oihw.shape == (cout, cin, 3, 3)
    # TODO(synk): odd H/W needs an extra padded tap row/col; not handled here.
    assert h % 2 == 0 and w_sp % 2 == 0, "even spatial dims assumed"
    ho, wo = h // 2, w_sp // 2
    wh = wo + 1

    if fuse_taps is None:
        fuse_taps = cin < 128               # small C: one fat K = 9*Cin matmul
    out_itemsize = jnp.dtype(x.dtype).itemsize
    budget, vmem_limit = _vmem_budget_and_limit()
    if tile_rows is None:
        tile_rows = _pick_tile_rows(ho, wo, cin, cout, out_itemsize, fuse_taps,
                                    budget,
                                    want_multi_tile=(n == 1 and ho >= 2))
    th = tile_rows
    assert ho % th == 0 and (th == ho or (th * wo) % 8 == 0), "bad tile_rows"
    nt = ho // th

    # --- single wrapper layout pass: cast + pad + parity de-interleave ------
    xb = x.astype(jnp.bfloat16)
    xp = jnp.pad(xb, ((0, 0), (1, 1), (1, 1), (0, 0)))        # (N, H+2, W+2, C)
    # main[n, 2p+q, i, j, :] = x_pad[n, 2i+p, 2j+q, :]   for i < Ho
    main = xp[:, :2 * ho].reshape(n, ho, 2, wh, 2, cin)
    main = main.transpose(0, 2, 4, 1, 3, 5).reshape(n, 4, ho, wh, cin)
    # Tiny per-tile halo: row (t+1)*TH of the p == 0 slabs (= padded row
    # 2*(t+1)*TH).  ~2/TH of one slab -- replaces the old full halo-stack pass.
    halo = xp[:, 2 * th::2 * th].reshape(n, nt, wh, 2, cin)
    halo = halo.transpose(0, 1, 3, 2, 4)                      # (N, T, 2, Wh, C)

    # (Cout, Cin, 3, 3) -> (kh, kw, Cin, Cout) -> (9*Cin, Cout), bf16
    w9 = jnp.transpose(w_oihw, (2, 3, 1, 0)).reshape(9 * cin, cout)
    w9 = w9.astype(jnp.bfloat16)
    b2 = b.reshape(1, cout).astype(jnp.float32)

    flops = 2 * n * ho * wo * 9 * cin * cout
    bytes_accessed = (main.size * 2 + halo.size * 2 + w9.size * 2
                      + b2.size * 4 + n * ho * wo * cout * out_itemsize)

    kernel = functools.partial(_downsample_kernel, fuse_taps=fuse_taps)
    out_flat = pl.pallas_call(
        kernel,
        out_shape=jax.ShapeDtypeStruct((n, ho * wo, cout), x.dtype),
        grid_spec=pltpu.PrefetchScalarGridSpec(
            num_scalar_prefetch=0,
            grid=(n, nt),
            in_specs=[
                pl.BlockSpec((None, 4, th, wh, cin),
                             lambda i, t: (i, 0, t, 0, 0)),
                pl.BlockSpec((None, None, 2, wh, cin),
                             lambda i, t: (i, t, 0, 0, 0)),
                # Constant-index blocks: Pallas skips re-fetch between steps.
                # TODO(synk): single-buffer these (pl.Buffered(1)) once
                #             pipeline_mode lands in the classic TPU pipeline.
                pl.BlockSpec((9 * cin, cout), lambda i, t: (0, 0)),
                pl.BlockSpec((1, cout), lambda i, t: (0, 0)),
            ],
            out_specs=pl.BlockSpec((None, th * wo, cout),
                                   lambda i, t: (i, t, 0)),
        ),
        compiler_params=pltpu.CompilerParams(
            dimension_semantics=("parallel", "parallel"),
            vmem_limit_bytes=vmem_limit,
        ),
        cost_estimate=pl.CostEstimate(flops=flops, transcendentals=0,
                                      bytes_accessed=int(bytes_accessed)),
    )(main, halo, w9, b2)

    return out_flat.reshape(n, ho, wo, cout)


def downsample(x_nchw, w_oihw, b, *, tile_rows=None):
    """PyTorch-layout entry point (NCHW in / NCHW out)."""
    out = downsample_nhwc(jnp.transpose(x_nchw, (0, 2, 3, 1)), w_oihw, b,
                          tile_rows=tile_rows)
    return jnp.transpose(out, (0, 3, 1, 2))


# ----------------------------------------------------------------------------
# Demo / correctness check
# ----------------------------------------------------------------------------
if __name__ == "__main__":
    def make_case(key, n, c, h, w):
        kx, kw_, kb = jax.random.split(key, 3)
        x = jax.random.normal(kx, (n, c, h, w), jnp.float32)
        bound = 1.0 / ((c * 9) ** 0.5)                 # Conv2d-style init
        wgt = jax.random.uniform(kw_, (c, c, 3, 3), jnp.float32, -bound, bound)
        bias = jax.random.uniform(kb, (c,), jnp.float32, -bound, bound)
        return x, wgt, bias

    def reference(x, wgt, bias):
        # Same bf16 input rounding as the kernel, f32 accumulation.
        xb = x.astype(jnp.bfloat16).astype(jnp.float32)
        wb = wgt.astype(jnp.bfloat16).astype(jnp.float32)
        out = jax.lax.conv_general_dilated(
            xb, wb, window_strides=(2, 2), padding=((1, 1), (1, 1)),
            dimension_numbers=("NCHW", "OIHW", "NCHW"))
        return out + bias.reshape(1, -1, 1, 1)

    run = jax.jit(downsample, static_argnames=("tile_rows",))

    cases = [
        dict(n=2, c=8, h=16, w=16, tile_rows=None),    # small-C fused-tap path
        dict(n=1, c=128, h=32, w=32, tile_rows=4),     # per-tap path, 4 row tiles
        dict(n=1, c=128, h=16, w=16, tile_rows=None),  # auto-pick, >= 2 tiles (v7x)
    ]
    key = jax.random.PRNGKey(0)
    for cfg in cases:
        key, sub = jax.random.split(key)
        x, wgt, bias = make_case(sub, cfg["n"], cfg["c"], cfg["h"], cfg["w"])
        out = jax.block_until_ready(
            run(x, wgt, bias, tile_rows=cfg["tile_rows"]))
        ref = reference(x, wgt, bias)
        assert out.shape == (cfg["n"], cfg["c"], cfg["h"] // 2, cfg["w"] // 2)
        err = float(jnp.max(jnp.abs(out - ref)))
        assert err < 5e-3, (cfg, err)

    print("KERNEL_OK")
</pallas_src>

<mosaic_0001>
module attributes {stable_mosaic.version = 11 : i64} {
  func.func @_downsample_kernel(%arg0: i32, %arg1: i32, %arg2: memref<1x4x8x9x8xbf16, #tpu.memory_space<vmem>>, %arg3: memref<1x1x2x9x8xbf16, #tpu.memory_space<vmem>>, %arg4: memref<72x8xbf16, #tpu.memory_space<vmem>>, %arg5: memref<1x8xf32, #tpu.memory_space<vmem>>, %arg6: memref<1x64x8xf32, #tpu.memory_space<vmem>>) attributes {dimension_semantics = [#tpu.dimension_semantics<parallel>, #tpu.dimension_semantics<parallel>], iteration_bounds = array<i64: 2, 1>, scalar_prefetch = 0 : i64, scratch_operands = 0 : i64, tpu.core_type = #tpu.core_type<tc>, window_params = [{transform_indices = @transform_0, window_bounds = array<i64: 1, 4, 8, 9, 8>}, {transform_indices = @transform_1, window_bounds = array<i64: 1, 1, 2, 9, 8>}, {pipeline_mode = #tpu.pipeline_mode<synchronous>, transform_indices = @transform_2, window_bounds = array<i64: 72, 8>}, {pipeline_mode = #tpu.pipeline_mode<synchronous>, transform_indices = @transform_3, window_bounds = array<i64: 1, 8>}, {transform_indices = @transform_4, window_bounds = array<i64: 1, 64, 8>}]} {
    %c0 = arith.constant 0 : index
    %c0_0 = arith.constant 0 : index
    %c0_1 = arith.constant 0 : index
    %c0_2 = arith.constant 0 : index
    %c0_3 = arith.constant 0 : index
    %0 = vector.load %arg3[%c0, %c0_0, %c0_1, %c0_2, %c0_3] : memref<1x1x2x9x8xbf16, #tpu.memory_space<vmem>>, vector<1x1x1x9x8xbf16>
    %1 = vector.shape_cast %0 : vector<1x1x1x9x8xbf16> to vector<1x9x8xbf16>
    %c0_4 = arith.constant 0 : index
    %c0_5 = arith.constant 0 : index
    %c1 = arith.constant 1 : index
    %c0_6 = arith.constant 0 : index
    %c0_7 = arith.constant 0 : index
    %2 = vector.load %arg2[%c0_4, %c0_5, %c1, %c0_6, %c0_7] : memref<1x4x8x9x8xbf16, #tpu.memory_space<vmem>>, vector<1x1x7x9x8xbf16>
    %3 = vector.shape_cast %2 : vector<1x1x7x9x8xbf16> to vector<7x9x8xbf16>
    %4 = tpu.concatenate %3, %1 in 0 : vector<7x9x8xbf16>, vector<1x9x8xbf16> -> vector<8x9x8xbf16>
    %c0_8 = arith.constant 0 : index
    %c0_9 = arith.constant 0 : index
    %c1_10 = arith.constant 1 : index
    %c0_11 = arith.constant 0 : index
    %c0_12 = arith.constant 0 : index
    %5 = vector.load %arg3[%c0_8, %c0_9, %c1_10, %c0_11, %c0_12] : memref<1x1x2x9x8xbf16, #tpu.memory_space<vmem>>, vector<1x1x1x9x8xbf16>
    %6 = vector.shape_cast %5 : vector<1x1x1x9x8xbf16> to vector<1x9x8xbf16>
    %c0_13 = arith.constant 0 : index
    %c1_14 = arith.constant 1 : index
    %c1_15 = arith.constant 1 : index
    %c0_16 = arith.constant 0 : index
    %c0_17 = arith.constant 0 : index
    %7 = vector.load %arg2[%c0_13, %c1_14, %c1_15, %c0_16, %c0_17] : memref<1x4x8x9x8xbf16, #tpu.memory_space<vmem>>, vector<1x1x7x9x8xbf16>
    %8 = vector.shape_cast %7 : vector<1x1x7x9x8xbf16> to vector<7x9x8xbf16>
    %9 = tpu.concatenate %8, %6 in 0 : vector<7x9x8xbf16>, vector<1x9x8xbf16> -> vector<8x9x8xbf16>
    %c0_18 = arith.constant 0 : index
    %c0_19 = arith.constant 0 : index
    %c0_20 = arith.constant 0 : index
    %c0_21 = arith.constant 0 : index
    %c0_22 = arith.constant 0 : index
    %10 = vector.load %arg2[%c0_18, %c0_19, %c0_20, %c0_21, %c0_22] : memref<1x4x8x9x8xbf16, #tpu.memory_space<vmem>>, vector<1x1x8x8x8xbf16>
    %11 = vector.shape_cast %10 : vector<1x1x8x8x8xbf16> to vector<8x8x8xbf16>
    %c0_23 = arith.constant 0 : index
    %c1_24 = arith.constant 1 : index
    %c0_25 = arith.constant 0 : index
    %c0_26 = arith.constant 0 : index
    %c0_27 = arith.constant 0 : index
    %12 = vector.load %arg2[%c0_23, %c1_24, %c0_25, %c0_26, %c0_27] : memref<1x4x8x9x8xbf16, #tpu.memory_space<vmem>>, vector<1x1x8x8x8xbf16>
    %13 = vector.shape_cast %12 : vector<1x1x8x8x8xbf16> to vector<8x8x8xbf16>
    %c0_28 = arith.constant 0 : index
    %c0_29 = arith.constant 0 : index
    %c0_30 = arith.constant 0 : index
    %c1_31 = arith.constant 1 : index
    %c0_32 = arith.constant 0 : index
    %14 = vector.load %arg2[%c0_28, %c0_29, %c0_30, %c1_31, %c0_32] : memref<1x4x8x9x8xbf16, #tpu.memory_space<vmem>>, vector<1x1x8x8x8xbf16>
    %15 = vector.shape_cast %14 : vector<1x1x8x8x8xbf16> to vector<8x8x8xbf16>
    %c0_33 = arith.constant 0 : index
    %c2 = arith.constant 2 : index
    %c0_34 = arith.constant 0 : index
    %c0_35 = arith.constant 0 : index
    %c0_36 = arith.constant 0 : index
    %16 = vector.load %arg2[%c0_33, %c2, %c0_34, %c0_35, %c0_36] : memref<1x4x8x9x8xbf16, #tpu.memory_space<vmem>>, vector<1x1x8x8x8xbf16>
    %17 = vector.shape_cast %16 : vector<1x1x8x8x8xbf16> to vector<8x8x8xbf16>
    %c0_37 = arith.constant 0 : index
    %c3 = arith.constant 3 : index
    %c0_38 = arith.constant 0 : index
    %c0_39 = arith.constant 0 : index
    %c0_40 = arith.constant 0 : index
    %18 = vector.load %arg2[%c0_37, %c3, %c0_38, %c0_39, %c0_40] : memref<1x4x8x9x8xbf16, #tpu.memory_space<vmem>>, vector<1x1x8x8x8xbf16>
    %19 = vector.shape_cast %18 : vector<1x1x8x8x8xbf16> to vector<8x8x8xbf16>
    %c0_41 = arith.constant 0 : index
    %c2_42 = arith.constant 2 : index
    %c0_43 = arith.constant 0 : index
    %c1_44 = arith.constant 1 : index
    %c0_45 = arith.constant 0 : index
    %20 = vector.load %arg2[%c0_41, %c2_42, %c0_43, %c1_44, %c0_45] : memref<1x4x8x9x8xbf16, #tpu.memory_space<vmem>>, vector<1x1x8x8x8xbf16>
    %21 = vector.shape_cast %20 : vector<1x1x8x8x8xbf16> to vector<8x8x8xbf16>
    %22 = vector.extract_strided_slice %4 {offsets = [0, 0, 0], sizes = [8, 8, 8], strides = [1, 1, 1]} : vector<8x9x8xbf16> to vector<8x8x8xbf16>
    %23 = vector.extract_strided_slice %9 {offsets = [0, 0, 0], sizes = [8, 8, 8], strides = [1, 1, 1]} : vector<8x9x8xbf16> to vector<8x8x8xbf16>
    %24 = vector.extract_strided_slice %4 {offsets = [0, 1, 0], sizes = [8, 8, 8], strides = [1, 1, 1]} : vector<8x9x8xbf16> to vector<8x8x8xbf16>
    %25 = tpu.concatenate %11, %13, %15, %17, %19, %21, %22, %23, %24 in 2 : vector<8x8x8xbf16>, vector<8x8x8xbf16>, vector<8x8x8xbf16>, vector<8x8x8xbf16>, vector<8x8x8xbf16>, vector<8x8x8xbf16>, vector<8x8x8xbf16>, vector<8x8x8xbf16>, vector<8x8x8xbf16> -> vector<8x8x72xbf16>
    %26 = vector.shape_cast %25 : vector<8x8x72xbf16> to vector<64x72xbf16>
    %c0_46 = arith.constant 0 : index
    %c0_47 = arith.constant 0 : index
    %27 = vector.load %arg4[%c0_46, %c0_47] : memref<72x8xbf16, #tpu.memory_space<vmem>>, vector<72x8xbf16>
    %cst = arith.constant dense<0.000000e+00> : vector<64x8xf32>
    %28 = tpu.matmul %26, %27, %cst {dimension_numbers = #tpu.dot_dimension_numbers<[1], [0], [0], [1], [0, 0, 1, 1], [], []>} : vector<64x72xbf16>, vector<72x8xbf16>, vector<64x8xf32> -> vector<64x8xf32>
    %c0_48 = arith.constant 0 : index
    %c0_49 = arith.constant 0 : index
    %29 = vector.load %arg5[%c0_48, %c0_49] : memref<1x8xf32, #tpu.memory_space<vmem>>, vector<1x8xf32>
    %30 = vector.broadcast %29 : vector<1x8xf32> to vector<64x8xf32>
    %31 = arith.addf %28, %30 : vector<64x8xf32>
    %c0_50 = arith.constant 0 : index
    %c0_51 = arith.constant 0 : index
    %c0_52 = arith.constant 0 : index
    %32 = vector.load %arg6[%c0_50, %c0_51, %c0_52] : memref<1x64x8xf32, #tpu.memory_space<vmem>>, vector<1x64x8xf32>
    %33 = vector.shape_cast %32 : vector<1x64x8xf32> to vector<64x8xf32>
    %34 = vector.shape_cast %31 : vector<64x8xf32> to vector<1x64x8xf32>
    tpu.vector_store %arg6[%c0_50, %c0_51, %c0_52], %34 {strides = array<i32>} : memref<1x64x8xf32, #tpu.memory_space<vmem>>, vector<1x64x8xf32>,
    return
  }
  func.func @transform_0(%arg0: i32, %arg1: i32) -> (i32, i32, i32, i32, i32) {
    %c0_i32 = arith.constant 0 : i32
    %c0_i32_0 = arith.constant 0 : i32
    %c0_i32_1 = arith.constant 0 : i32
    %c0_i32_2 = arith.constant 0 : i32
    return %arg0, %c0_i32, %arg1, %c0_i32_0, %c0_i32_1 : i32, i32, i32, i32, i32
  }
  func.func @transform_1(%arg0: i32, %arg1: i32) -> (i32, i32, i32, i32, i32) {
    %c0_i32 = arith.constant 0 : i32
    %c0_i32_0 = arith.constant 0 : i32
    %c0_i32_1 = arith.constant 0 : i32
    %c0_i32_2 = arith.constant 0 : i32
    return %arg0, %arg1, %c0_i32, %c0_i32_0, %c0_i32_1 : i32, i32, i32, i32, i32
  }
  func.func @transform_2(%arg0: i32, %arg1: i32) -> (i32, i32) {
    %c0_i32 = arith.constant 0 : i32
    %c0_i32_0 = arith.constant 0 : i32
    %c0_i32_1 = arith.constant 0 : i32
    return %c0_i32, %c0_i32_0 : i32, i32
  }
  func.func @transform_3(%arg0: i32, %arg1: i32) -> (i32, i32) {
    %c0_i32 = arith.constant 0 : i32
    %c0_i32_0 = arith.constant 0 : i32
    %c0_i32_1 = arith.constant 0 : i32
    return %c0_i32, %c0_i32_0 : i32, i32
  }
  func.func @transform_4(%arg0: i32, %arg1: i32) -> (i32, i32, i32) {
    %c0_i32 = arith.constant 0 : i32
    %c0_i32_0 = arith.constant 0 : i32
    return %arg0, %arg1, %c0_i32 : i32, i32, i32
  }
}

</mosaic_0001>

<llo_original>
// kernel: downsample.1
$region0: #{downsample.1}
  #allocation0 [shape = 'u32[]', space=smem, size = 0x4, offset = 0x4, fixed_abs, tag = 'smem constant byte address 0x4 - core index']
  #allocation1 [shape = 'u32[144,128]{1,0:T(1,128)}', space=vmem, size = 0x12000, scoped, tag = 'internal scratch']
  %s0 = inlined_call_operand.vmem [shape: bf16[2,4,8,9,8], index: 0, kind: input, shape index: {}]
  %s1 = inlined_call_operand.vmem [shape: bf16[2,1,2,9,8], index: 1, kind: input, shape index: {}]
  %s2 = inlined_call_operand.vmem [shape: bf16[72,8], index: 2, kind: input, shape index: {}]
  %s3 = inlined_call_operand.vmem [shape: f32[1,8], index: 3, kind: input, shape index: {}]
  %s4 = inlined_call_operand.vmem [shape: f32[2,64,8], index: 4, kind: output, shape index: {}]
  %s5 = sld [smem:[#allocation0]]
  $region49: #{downsample.1} parent=0
    _
  %s7 = ssub.s32 1, %s5
  %s8 = scalar_select 0, %s7, %s5
  loop: start=0, step=1, limit=4
  $region2: #{downsample.1} parent=0 // loop_pre_header
    _
  $region3: #{downsample.1} parent=0 // loop_header
    %s10 = sphi 0, %s14
    %p11 = scmp.ge.s32.totalorder %s10, 4
    %s17 = sphi 0, %s29
    %s18 = sphi 0, %s25
    %s19 = sphi 0, %s17
    %s20 = sphi 0, %s18
    %s21 = sphi 0, %s19
    %s22 = sphi 0, %s20
    %s34 = sphi 0, %s36
    %s37 = sphi 0, %s34
    %s38 = sphi 0, %s37
    %s54 = sphi 0, %s38
    %s62 = sphi 0, %s64
    %s65 = sphi 0, %s62
    %s66 = sphi 0, %s65
    %s82 = sphi 0, %s66
    %s86 = sphi 0, %s86
    %s88 = sphi 0, %s86
    %s89 = sphi 0, %s88
    %s103 = sphi 0, %s89
    %s107 = sphi 0, %s107
    %s109 = sphi 0, %s107
    %s110 = sphi 0, %s109
    %s124 = sphi 0, %s110
    %s132 = sphi 0, %s134
    %s135 = sphi 0, %s132
    %s136 = sphi 0, %s135
    %s152 = sphi 0, %s136
  $region4: #{downsample.1} parent=0 // loop_header_branch
    %13 = sbr.rel (%p11) target = $region8
  $region5: #{downsample.1} parent=0 // loop_body
    %s15 = ssub.s32 %s10, 1
    %s16 = ssub.s32 %s10, 2
    %s23 = sadd.s32 1, %s18
    %p24 = scmp.ge.s32.totalorder %s23, 1
    %s25 = scalar_select %p24, 0, %s23
    %s26 = sadd.s32 1, %s17
    %s27 = scalar_select %p24, %s26, %s17
    %p28 = scmp.ge.s32.totalorder %s27, 2
    %s29 = scalar_select %p28, 0, %s27
    %s30 = ssub.s32 %s17, %s29
    %s31 = ssub.s32 %s18, %s25
    %s32 = sor.u32 %s30, %s31
    %p33 = scmp.eq.s32.totalorder %s32, 0
    %s35 = sadd.s32 %s34, 1
    %s36 = scalar_select %p33, %s34, %s35
    %p39 = pneg %p33
    %p40 = scmp.eq.s32.totalorder %s10, 1
    %p41 = por %p39, %p40
    %p42 = scmp.ne.s32.totalorder %s34, %s37
    %p43 = scmp.eq.s32.totalorder %s10, 0
    %p44 = por %p42, %p43
    %p45 = scmp.ne.s32.totalorder %s34, %s37
    %p46 = scmp.eq.s32.totalorder %s15, 1
    %p47 = por %p45, %p46
    %p48 = scmp.ne.s32.totalorder %s37, %s38
    %p49 = scmp.eq.s32.totalorder %s15, 0
    %p50 = por %p48, %p49
    %p51 = scmp.ne.s32.totalorder %s37, %s38
    %p52 = scmp.eq.s32.totalorder %s16, 1
    %p53 = por %p51, %p52
    %p55 = scmp.ne.s32.totalorder %s38, %s54
    %p56 = scmp.eq.s32.totalorder %s16, 0
    %p57 = por %p55, %p56
    %s58 = ssub.s32 %s17, %s29
    %s59 = ssub.s32 %s18, %s25
    %s60 = sor.u32 %s58, %s59
    %p61 = scmp.eq.s32.totalorder %s60, 0
    %s63 = sadd.s32 %s62, 1
    %s64 = scalar_select %p61, %s62, %s63
    %p67 = pneg %p61
    %p68 = scmp.eq.s32.totalorder %s10, 1
    %p69 = por %p67, %p68
    %p70 = scmp.ne.s32.totalorder %s62, %s65
    %p71 = scmp.eq.s32.totalorder %s10, 0
    %p72 = por %p70, %p71
    %p73 = scmp.ne.s32.totalorder %s62, %s65
    %p74 = scmp.eq.s32.totalorder %s15, 1
    %p75 = por %p73, %p74
    %p76 = scmp.ne.s32.totalorder %s65, %s66
    %p77 = scmp.eq.s32.totalorder %s15, 0
    %p78 = por %p76, %p77
    %p79 = scmp.ne.s32.totalorder %s65, %s66
    %p80 = scmp.eq.s32.totalorder %s16, 1
    %p81 = por %p79, %p80
    %p83 = scmp.ne.s32.totalorder %s66, %s82
    %p84 = scmp.eq.s32.totalorder %s16, 0
    %p85 = por %p83, %p84
    %s87 = sadd.s32 %s86, 1
    %p90 = scmp.eq.s32.totalorder %s10, 1
    %p91 = scmp.ne.s32.totalorder %s86, %s88
    %p92 = scmp.eq.s32.totalorder %s10, 0
    %p93 = por %p91, %p92
    %p94 = scmp.ne.s32.totalorder %s86, %s88
    %p95 = scmp.eq.s32.totalorder %s15, 1
    %p96 = por %p94, %p95
    %p97 = scmp.ne.s32.totalorder %s88, %s89
    %p98 = scmp.eq.s32.totalorder %s15, 0
    %p99 = por %p97, %p98
    %p100 = scmp.ne.s32.totalorder %s88, %s89
    %p101 = scmp.eq.s32.totalorder %s16, 1
    %p102 = por %p100, %p101
    %p104 = scmp.ne.s32.totalorder %s89, %s103
    %p105 = scmp.eq.s32.totalorder %s16, 0
    %p106 = por %p104, %p105
    %s108 = sadd.s32 %s107, 1
    %p111 = scmp.eq.s32.totalorder %s10, 1
    %p112 = scmp.ne.s32.totalorder %s107, %s109
    %p113 = scmp.eq.s32.totalorder %s10, 0
    %p114 = por %p112, %p113
    %p115 = scmp.ne.s32.totalorder %s107, %s109
    %p116 = scmp.eq.s32.totalorder %s15, 1
    %p117 = por %p115, %p116
    %p118 = scmp.ne.s32.totalorder %s109, %s110
    %p119 = scmp.eq.s32.totalorder %s15, 0
    %p120 = por %p118, %p119
    %p121 = scmp.ne.s32.totalorder %s109, %s110
    %p122 = scmp.eq.s32.totalorder %s16, 1
    %p123 = por %p121, %p122
    %p125 = scmp.ne.s32.totalorder %s110, %s124
    %p126 = scmp.eq.s32.totalorder %s16, 0
    %p127 = por %p125, %p126
    %s128 = ssub.s32 %s17, %s29
    %s129 = ssub.s32 %s18, %s25
    %s130 = sor.u32 %s128, %s129
    %p131 = scmp.eq.s32.totalorder %s130, 0
    %s133 = sadd.s32 %s132, 1
    %s134 = scalar_select %p131, %s132, %s133
    %p137 = pneg %p131
    %p138 = scmp.eq.s32.totalorder %s10, 1
    %p139 = por %p137, %p138
    %p140 = scmp.ne.s32.totalorder %s132, %s135
    %p141 = scmp.eq.s32.totalorder %s10, 0
    %p142 = por %p140, %p141
    %p143 = scmp.ne.s32.totalorder %s132, %s135
    %p144 = scmp.eq.s32.totalorder %s15, 1
    %p145 = por %p143, %p144
    %p146 = scmp.ne.s32.totalorder %s135, %s136
    %p147 = scmp.eq.s32.totalorder %s15, 0
    %p148 = por %p146, %p147
    %p149 = scmp.ne.s32.totalorder %s135, %s136
    %p150 = scmp.eq.s32.totalorder %s16, 1
    %p151 = por %p149, %p150
    %p153 = scmp.ne.s32.totalorder %s136, %s152
    %p154 = scmp.eq.s32.totalorder %s16, 0
    %p155 = por %p153, %p154
    %p156 = scmp.le.s32.totalorder 1, %s10
    %p157 = scmp.lt.s32.totalorder %s10, 3
    %p158 = pnand %p156, %p157
    %p159 = pneg %p158
    // Predicated region
    $region9: #{downsample.1} parent=5 // pred_check
      _
    $region10: #{downsample.1} parent=5 // pred_check_branch
      %161 = sbr.rel (%p158) target = $region12
    $region11: #{downsample.1} parent=5 // pred_region
      %s162 = ssub.s32 %s10, 1
      // Predicated region
      $region13: #{downsample.1} parent=11 // pred_check
        %p163 = pneg %p99
      $region14: #{downsample.1} parent=11 // pred_check_branch
        %165 = sbr.rel (%p163) target = $region16
      $region15: #{downsample.1} parent=11 // pred_region
        _
      $region16: #{downsample.1} parent=11 // pred_fallthru
        _
      // Predicated region
      $region17: #{downsample.1} parent=11 // pred_check
        %p166 = pneg %p120
      $region18: #{downsample.1} parent=11 // pred_check_branch
        %168 = sbr.rel (%p166) target = $region20
      $region19: #{downsample.1} parent=11 // pred_region
        _
      $region20: #{downsample.1} parent=11 // pred_fallthru
        _
    $region12: #{downsample.1} parent=5 // pred_fallthru
      _
    %p169 = scmp.lt.s32.totalorder %s10, 2
    // Predicated region
    $region21: #{downsample.1} parent=5 // pred_check
      %p170 = pneg %p169
    $region22: #{downsample.1} parent=5 // pred_check_branch
      %172 = sbr.rel (%p170) target = $region24
    $region23: #{downsample.1} parent=5 // pred_region
      // Predicated region
      $region25: #{downsample.1} parent=23 // pred_check
        %p173 = pneg %p44
      $region26: #{downsample.1} parent=23 // pred_check_branch
        %175 = sbr.rel (%p173) target = $region28
      $region27: #{downsample.1} parent=23 // pred_region
        %s176 = smul.u32 8, %s18
        %p177 = scmp.lt.s32.totalorder %s17, 1
        %s178 = scalar_select %p177, %s17, 1
        %p179 = scmp.lt.s32.totalorder %s176, 7
        %s180 = scalar_select %p179, %s176, 7
        %s181 = smul.addr %s180, 2
        %s182 = smul.addr %s178, 64
        %s183 = sadd.s32 %s181, %s182
        %s184 = smul.addr %s183, 4
        %s185 = scalar_lea.vmem %s0, %s184
        %s186 = smul.u32 8, %s18
      $region28: #{downsample.1} parent=23 // pred_fallthru
        _
      // Predicated region
      $region29: #{downsample.1} parent=23 // pred_check
        %p187 = pneg %p72
      $region30: #{downsample.1} parent=23 // pred_check_branch
        %189 = sbr.rel (%p187) target = $region32
      $region31: #{downsample.1} parent=23 // pred_region
        %p190 = scmp.lt.s32.totalorder %s17, 1
        %s191 = scalar_select %p190, %s17, 1
        %p192 = scmp.lt.s32.totalorder %s18, 0
        %s193 = scalar_select %p192, %s18, 0
        %s194 = smul.addr %s193, 4
        %s195 = smul.addr %s191, 4
        %s196 = sadd.s32 %s194, %s195
        %s197 = smul.addr %s196, 4
        %s198 = scalar_lea.vmem %s1, %s197
      $region32: #{downsample.1} parent=23 // pred_fallthru
        _
    $region24: #{downsample.1} parent=5 // pred_fallthru
      _
    %p199 = scmp.le.s32.totalorder 1, %s10
    %p200 = scmp.lt.s32.totalorder %s10, 3
    %p201 = pnand %p199, %p200
    %p202 = pneg %p201
    // Predicated region
    $region33: #{downsample.1} parent=5 // pred_check
      _
    $region34: #{downsample.1} parent=5 // pred_check_branch
      %204 = sbr.rel (%p201) target = $region36
    $region35: #{downsample.1} parent=5 // pred_region
      %s205 = ssub.s32 %s10, 1
      %s206 = smul.u32 8, %s20
      %p207 = scmp.lt.s32.totalorder %s19, 1
      %s208 = scalar_select %p207, %s19, 1
      %p209 = scmp.lt.s32.totalorder %s206, 7
      %s210 = scalar_select %p209, %s206, 7
      %s211 = smul.addr %s210, 2
      %s212 = smul.addr %s208, 64
      %s213 = sadd.s32 %s211, %s212
      %s214 = smul.addr %s213, 4
      %s215 = scalar_lea.vmem %s0, %s214
      %p216 = pneg %p50
      %p217 = pneg %p47
      %p218 = scmp.lt.s32.totalorder %s19, 1
      %s219 = scalar_select %p218, %s19, 1
      %p220 = scmp.lt.s32.totalorder %s20, 0
      %s221 = scalar_select %p220, %s20, 0
      %s222 = smul.addr %s221, 4
      %s223 = smul.addr %s219, 4
      %s224 = sadd.s32 %s222, %s223
      %s225 = smul.addr %s224, 4
      %s226 = scalar_lea.vmem %s1, %s225
      %p227 = pneg %p78
      %p228 = pneg %p75
      %p229 = pneg %p99
      %p230 = pneg %p96
      %p231 = pneg %p120
      %p232 = pneg %p117
      %p233 = pneg %p148
      %p234 = pneg %p145
      %s235 = smul.u32 8, %s20
      %p236 = scmp.lt.s32.totalorder %s19, 1
      %s237 = scalar_select %p236, %s19, 1
      %p238 = scmp.lt.s32.totalorder %s235, 7
      %s239 = scalar_select %p238, %s235, 7
      %s240 = smul.addr %s237, 8
      %s241 = sadd.s32 %s239, %s240
      %s242 = smul.addr %s241, 8
      %s243 = scalar_lea.vmem %s4, %s242
      %s244 = smul.u32 8, %s20
      %p245 = scmp.lt.s32.totalorder %s19, 1
      %s246 = scalar_select %p245, %s19, 1
      %p247 = scmp.lt.s32.totalorder %s244, 7
      %s248 = scalar_select %p247, %s244, 7
      %s249 = smul.addr %s248, 2
      %s250 = smul.addr %s246, 64
      %s251 = sadd.s32 %s249, %s250
      %s252 = smul.addr %s251, 4
      %s253 = scalar_lea.vmem %s0, %s252
      %s254 = smul.u32 8, %s20
      %p255 = scmp.lt.s32.totalorder %s19, 1
      %s256 = scalar_select %p255, %s19, 1
      %p257 = scmp.lt.s32.totalorder %s20, 0
      %s258 = scalar_select %p257, %s20, 0
      %s259 = smul.addr %s258, 4
      %s260 = smul.addr %s256, 4
      %s261 = sadd.s32 %s259, %s260
      %s262 = smul.addr %s261, 4
      %s263 = scalar_lea.vmem %s1, %s262
      %s264 = smul.u32 8, %s20
      %p265 = scmp.lt.s32.totalorder %s19, 1
      %s266 = scalar_select %p265, %s19, 1
      %p267 = scmp.lt.s32.totalorder %s264, 7
      %s268 = scalar_select %p267, %s264, 7
      %s269 = smul.addr %s266, 8
      %s270 = sadd.s32 %s268, %s269
      %s271 = smul.addr %s270, 8
      %s272 = scalar_lea.vmem %s4, %s271
      %s273 = smul.u32 8, %s20
      %v275 = vld [vmem:[%s263] sm:$0xf]
      %v276 = vld [vmem:[%s263 + $0x4] sm:$0x1]
      %s277 = scalar_lea.vmem %s253, 8
      %v278 = vld [vmem:[%s277] sm:$0xf]
      %v279 = vld [vmem:[%s277 + $0x4] sm:$0x1]
      %v280 = vld [vmem:[%s277 + $0x8] sm:$0xf]
      %v281 = vld [vmem:[%s277 + $0xc] sm:$0x1]
      %v282 = vld [vmem:[%s277 + $0x10] sm:$0xf]
      %v283 = vld [vmem:[%s277 + $0x14] sm:$0x1]
      %v284 = vld [vmem:[%s277 + $0x18] sm:$0xf]
      %v285 = vld [vmem:[%s277 + $0x1c] sm:$0x1]
      %v286 = vld [vmem:[%s277 + $0x20] sm:$0xf]
      %v287 = vld [vmem:[%s277 + $0x24] sm:$0x1]
      %v288 = vld [vmem:[%s277 + $0x28] sm:$0xf]
      %v289 = vld [vmem:[%s277 + $0x2c] sm:$0x1]
      %v290 = vld [vmem:[%s277 + $0x30] sm:$0xf]
      %v291 = vld [vmem:[%s277 + $0x34] sm:$0x1]
      %s292 = scalar_lea.vmem %s263, 8
      %v293 = vld [vmem:[%s292] sm:$0xf]
      %s294 = scalar_lea.vmem %s253, 72
      %v295 = vld [vmem:[%s294] sm:$0xf]
      %v296 = vld [vmem:[%s294 + $0x8] sm:$0xf]
      %v297 = vld [vmem:[%s294 + $0x10] sm:$0xf]
      %v298 = vld [vmem:[%s294 + $0x18] sm:$0xf]
      %v299 = vld [vmem:[%s294 + $0x20] sm:$0xf]
      %v300 = vld [vmem:[%s294 + $0x28] sm:$0xf]
      %v301 = vld [vmem:[%s294 + $0x30] sm:$0xf]
      %v302 = vld [vmem:[%s253] sm:$0xf]
      %v303 = vld [vmem:[%s253 + $0x8] sm:$0xf]
      %v304 = vld [vmem:[%s253 + $0x10] sm:$0xf]
      %v305 = vld [vmem:[%s253 + $0x18] sm:$0xf]
      %v306 = vld [vmem:[%s253 + $0x20] sm:$0xf]
      %v307 = vld [vmem:[%s253 + $0x28] sm:$0xf]
      %v308 = vld [vmem:[%s253 + $0x30] sm:$0xf]
      %v309 = vld [vmem:[%s253 + $0x38] sm:$0xf]
      %s310 = scalar_lea.vmem %s253, 64
      %v311 = vld [vmem:[%s310] sm:$0xf]
      %v312 = vld [vmem:[%s310 + $0x8] sm:$0xf]
      %v313 = vld [vmem:[%s310 + $0x10] sm:$0xf]
      %v314 = vld [vmem:[%s310 + $0x18] sm:$0xf]
      %v315 = vld [vmem:[%s310 + $0x20] sm:$0xf]
      %v316 = vld [vmem:[%s310 + $0x28] sm:$0xf]
      %v317 = vld [vmem:[%s310 + $0x30] sm:$0xf]
      %v318 = vld [vmem:[%s310 + $0x38] sm:$0xf]
      %v319 = vld [vmem:[%s253 + $0x4] sm:$0x1]
      %v320 = vld [vmem:[%s253 + $0xc] sm:$0x1]
      %v321 = vld [vmem:[%s253 + $0x14] sm:$0x1]
      %v322 = vld [vmem:[%s253 + $0x1c] sm:$0x1]
      %v323 = vld [vmem:[%s253 + $0x24] sm:$0x1]
      %v324 = vld [vmem:[%s253 + $0x2c] sm:$0x1]
      %v325 = vld [vmem:[%s253 + $0x34] sm:$0x1]
      %v326 = vld [vmem:[%s253 + $0x3c] sm:$0x1]
      %s327 = scalar_lea.vmem %s253, 128
      %v328 = vld [vmem:[%s327] sm:$0xf]
      %v329 = vld [vmem:[%s327 + $0x8] sm:$0xf]
      %v330 = vld [vmem:[%s327 + $0x10] sm:$0xf]
      %v331 = vld [vmem:[%s327 + $0x18] sm:$0xf]
      %v332 = vld [vmem:[%s327 + $0x20] sm:$0xf]
      %v333 = vld [vmem:[%s327 + $0x28] sm:$0xf]
      %v334 = vld [vmem:[%s327 + $0x30] sm:$0xf]
      %v335 = vld [vmem:[%s327 + $0x38] sm:$0xf]
      %s336 = scalar_lea.vmem %s253, 192
      %v337 = vld [vmem:[%s336] sm:$0xf]
      %v338 = vld [vmem:[%s336 + $0x8] sm:$0xf]
      %v339 = vld [vmem:[%s336 + $0x10] sm:$0xf]
      %v340 = vld [vmem:[%s336 + $0x18] sm:$0xf]
      %v341 = vld [vmem:[%s336 + $0x20] sm:$0xf]
      %v342 = vld [vmem:[%s336 + $0x28] sm:$0xf]
      %v343 = vld [vmem:[%s336 + $0x30] sm:$0xf]
      %v344 = vld [vmem:[%s336 + $0x38] sm:$0xf]
      %v345 = vld [vmem:[%s327 + $0x4] sm:$0x1]
      %v346 = vld [vmem:[%s327 + $0xc] sm:$0x1]
      %v347 = vld [vmem:[%s327 + $0x14] sm:$0x1]
      %v348 = vld [vmem:[%s327 + $0x1c] sm:$0x1]
      %v349 = vld [vmem:[%s327 + $0x24] sm:$0x1]
      %v350 = vld [vmem:[%s327 + $0x2c] sm:$0x1]
      %v351 = vld [vmem:[%s327 + $0x34] sm:$0x1]
      %v352 = vld [vmem:[%s327 + $0x3c] sm:$0x1]
      %v361 = vunpack.c.l.b16 %v311
      %v362 = vunpack.c.l.b16 %v312
      %v363 = vunpack.c.l.b16 %v313
      %v364 = vunpack.c.l.b16 %v314
      %v365 = vunpack.c.l.b16 %v315
      %v366 = vunpack.c.l.b16 %v316
      %v367 = vunpack.c.l.b16 %v317
      %v368 = vunpack.c.l.b16 %v318
      %v369 = vpack.c.b16 %v361, %v361
      %v370 = vpack.c.b16 %v362, %v362
      %v371 = vpack.c.b16 %v363, %v363
      %v372 = vpack.c.b16 %v364, %v364
      %v373 = vpack.c.b16 %v365, %v365
      %v374 = vpack.c.b16 %v366, %v366
      %v375 = vpack.c.b16 %v367, %v367
      %v376 = vpack.c.b16 %v368, %v368
      %377 = vrot.lane.b32.xlu0 %v369, 8
      %v378 = vpop.permute.xlu0 %377
      %379 = vrot.lane.b32.xlu0 %v370, 8
      %v380 = vpop.permute.xlu0 %379
      %381 = vrot.lane.b32.xlu0 %v371, 8
      %v382 = vpop.permute.xlu0 %381
      %383 = vrot.lane.b32.xlu0 %v372, 8
      %v384 = vpop.permute.xlu0 %383
      %385 = vrot.lane.b32.xlu0 %v373, 8
      %v386 = vpop.permute.xlu0 %385
      %387 = vrot.lane.b32.xlu0 %v374, 8
      %v388 = vpop.permute.xlu0 %387
      %389 = vrot.lane.b32.xlu0 %v375, 8
      %v390 = vpop.permute.xlu0 %389
      %391 = vrot.lane.b32.xlu0 %v376, 8
      %v392 = vpop.permute.xlu0 %391
      %v409 = vunpack.c.l.b16 %v302
      %v410 = vunpack.c.l.b16 %v319
      %v411 = vunpack.c.l.b16 %v303
      %v412 = vunpack.c.l.b16 %v320
      %v413 = vunpack.c.l.b16 %v304
      %v414 = vunpack.c.l.b16 %v321
      %v415 = vunpack.c.l.b16 %v305
      %v416 = vunpack.c.l.b16 %v322
      %v417 = vunpack.c.l.b16 %v306
      %v418 = vunpack.c.l.b16 %v323
      %v419 = vunpack.c.l.b16 %v307
      %v420 = vunpack.c.l.b16 %v324
      %v421 = vunpack.c.l.b16 %v308
      %v422 = vunpack.c.l.b16 %v325
      %v423 = vunpack.c.l.b16 %v309
      %v424 = vunpack.c.l.b16 %v326
      %v425 = vpack.c.b16 %v410, %v409
      %v426 = vpack.c.b16 %v412, %v411
      %v427 = vpack.c.b16 %v414, %v413
      %v428 = vpack.c.b16 %v416, %v415
      %v429 = vpack.c.b16 %v418, %v417
      %v430 = vpack.c.b16 %v420, %v419
      %v431 = vpack.c.b16 %v422, %v421
      %v432 = vpack.c.b16 %v424, %v423
      %v434 = vshrl.u32 %v425, 16
      %v436 = vshll.u32 %v425, 16
      %v438 = vrot.slane %v436, 1
      %v439 = vor.u32 %v434, %v438
      %v441 = vshrl.u32 %v426, 16
      %v443 = vshll.u32 %v426, 16
      %v445 = vrot.slane %v443, 1
      %v446 = vor.u32 %v441, %v445
      %v448 = vshrl.u32 %v427, 16
      %v450 = vshll.u32 %v427, 16
      %v452 = vrot.slane %v450, 1
      %v453 = vor.u32 %v448, %v452
      %v455 = vshrl.u32 %v428, 16
      %v457 = vshll.u32 %v428, 16
      %v459 = vrot.slane %v457, 1
      %v460 = vor.u32 %v455, %v459
      %v462 = vshrl.u32 %v429, 16
      %v464 = vshll.u32 %v429, 16
      %v466 = vrot.slane %v464, 1
      %v467 = vor.u32 %v462, %v466
      %v469 = vshrl.u32 %v430, 16
      %v471 = vshll.u32 %v430, 16
      %v473 = vrot.slane %v471, 1
      %v474 = vor.u32 %v469, %v473
      %v476 = vshrl.u32 %v431, 16
      %v478 = vshll.u32 %v431, 16
      %v480 = vrot.slane %v478, 1
      %v481 = vor.u32 %v476, %v480
      %v483 = vshrl.u32 %v432, 16
      %v485 = vshll.u32 %v432, 16
      %v487 = vrot.slane %v485, 1
      %v488 = vor.u32 %v483, %v487
      %489 = vrot.lane.b32.xlu0 %v439, 16
      %v490 = vpop.permute.xlu0 %489
      %491 = vrot.lane.b32.xlu0 %v446, 16
      %v492 = vpop.permute.xlu0 %491
      %493 = vrot.lane.b32.xlu0 %v453, 16
      %v494 = vpop.permute.xlu0 %493
      %495 = vrot.lane.b32.xlu0 %v460, 16
      %v496 = vpop.permute.xlu0 %495
      %497 = vrot.lane.b32.xlu0 %v467, 16
      %v498 = vpop.permute.xlu0 %497
      %499 = vrot.lane.b32.xlu0 %v474, 16
      %v500 = vpop.permute.xlu0 %499
      %501 = vrot.lane.b32.xlu0 %v481, 16
      %v502 = vpop.permute.xlu0 %501
      %503 = vrot.lane.b32.xlu0 %v488, 16
      %v504 = vpop.permute.xlu0 %503
      %v513 = vunpack.c.l.b16 %v328
      %v514 = vunpack.c.l.b16 %v329
      %v515 = vunpack.c.l.b16 %v330
      %v516 = vunpack.c.l.b16 %v331
      %v517 = vunpack.c.l.b16 %v332
      %v518 = vunpack.c.l.b16 %v333
      %v519 = vunpack.c.l.b16 %v334
      %v520 = vunpack.c.l.b16 %v335
      %v521 = vpack.c.b16 %v513, %v513
      %v522 = vpack.c.b16 %v514, %v514
      %v523 = vpack.c.b16 %v515, %v515
      %v524 = vpack.c.b16 %v516, %v516
      %v525 = vpack.c.b16 %v517, %v517
      %v526 = vpack.c.b16 %v518, %v518
      %v527 = vpack.c.b16 %v519, %v519
      %v528 = vpack.c.b16 %v520, %v520
      %529 = vrot.lane.b32.xlu0 %v521, 24
      %v530 = vpop.permute.xlu0 %529
      %531 = vrot.lane.b32.xlu0 %v522, 24
      %v532 = vpop.permute.xlu0 %531
      %533 = vrot.lane.b32.xlu0 %v523, 24
      %v534 = vpop.permute.xlu0 %533
      %535 = vrot.lane.b32.xlu0 %v524, 24
      %v536 = vpop.permute.xlu0 %535
      %537 = vrot.lane.b32.xlu0 %v525, 24
      %v538 = vpop.permute.xlu0 %537
      %539 = vrot.lane.b32.xlu0 %v526, 24
      %v540 = vpop.permute.xlu0 %539
      %541 = vrot.lane.b32.xlu0 %v527, 24
      %v542 = vpop.permute.xlu0 %541
      %543 = vrot.lane.b32.xlu0 %v528, 24
      %v544 = vpop.permute.xlu0 %543
      %v553 = vunpack.c.l.b16 %v337
      %v554 = vunpack.c.l.b16 %v338
      %v555 = vunpack.c.l.b16 %v339
      %v556 = vunpack.c.l.b16 %v340
      %v557 = vunpack.c.l.b16 %v341
      %v558 = vunpack.c.l.b16 %v342
      %v559 = vunpack.c.l.b16 %v343
      %v560 = vunpack.c.l.b16 %v344
      %v561 = vpack.c.b16 %v553, %v553
      %v562 = vpack.c.b16 %v554, %v554
      %v563 = vpack.c.b16 %v555, %v555
      %v564 = vpack.c.b16 %v556, %v556
      %v565 = vpack.c.b16 %v557, %v557
      %v566 = vpack.c.b16 %v558, %v558
      %v567 = vpack.c.b16 %v559, %v559
      %v568 = vpack.c.b16 %v560, %v560
      %569 = vrot.lane.b32.xlu0 %v561, 32
      %v570 = vpop.permute.xlu0 %569
      %571 = vrot.lane.b32.xlu0 %v562, 32
      %v572 = vpop.permute.xlu0 %571
      %573 = vrot.lane.b32.xlu0 %v563, 32
      %v574 = vpop.permute.xlu0 %573
      %575 = vrot.lane.b32.xlu0 %v564, 32
      %v576 = vpop.permute.xlu0 %575
      %577 = vrot.lane.b32.xlu0 %v565, 32
      %v578 = vpop.permute.xlu0 %577
      %579 = vrot.lane.b32.xlu0 %v566, 32
      %v580 = vpop.permute.xlu0 %579
      %581 = vrot.lane.b32.xlu0 %v567, 32
      %v582 = vpop.permute.xlu0 %581
      %583 = vrot.lane.b32.xlu0 %v568, 32
      %v584 = vpop.permute.xlu0 %583
      %v593 = vunpack.c.l.b16 %v345
      %v594 = vunpack.c.l.b16 %v346
      %v595 = vunpack.c.l.b16 %v347
      %v596 = vunpack.c.l.b16 %v348
      %v597 = vunpack.c.l.b16 %v349
      %v598 = vunpack.c.l.b16 %v350
      %v599 = vunpack.c.l.b16 %v351
      %v600 = vunpack.c.l.b16 %v352
      %v601 = vpack.c.b16 %v593, %v513
      %v602 = vpack.c.b16 %v594, %v514
      %v603 = vpack.c.b16 %v595, %v515
      %v604 = vpack.c.b16 %v596, %v516
      %v605 = vpack.c.b16 %v597, %v517
      %v606 = vpack.c.b16 %v598, %v518
      %v607 = vpack.c.b16 %v599, %v519
      %v608 = vpack.c.b16 %v600, %v520
      %v610 = vshrl.u32 %v601, 16
      %v612 = vshll.u32 %v601, 16
      %v614 = vrot.slane %v612, 1
      %v615 = vor.u32 %v610, %v614
      %v617 = vshrl.u32 %v602, 16
      %v619 = vshll.u32 %v602, 16
      %v621 = vrot.slane %v619, 1
      %v622 = vor.u32 %v617, %v621
      %v624 = vshrl.u32 %v603, 16
      %v626 = vshll.u32 %v603, 16
      %v628 = vrot.slane %v626, 1
      %v629 = vor.u32 %v624, %v628
      %v631 = vshrl.u32 %v604, 16
      %v633 = vshll.u32 %v604, 16
      %v635 = vrot.slane %v633, 1
      %v636 = vor.u32 %v631, %v635
      %v638 = vshrl.u32 %v605, 16
      %v640 = vshll.u32 %v605, 16
      %v642 = vrot.slane %v640, 1
      %v643 = vor.u32 %v638, %v642
      %v645 = vshrl.u32 %v606, 16
      %v647 = vshll.u32 %v606, 16
      %v649 = vrot.slane %v647, 1
      %v650 = vor.u32 %v645, %v649
      %v652 = vshrl.u32 %v607, 16
      %v654 = vshll.u32 %v607, 16
      %v656 = vrot.slane %v654, 1
      %v657 = vor.u32 %v652, %v656
      %v659 = vshrl.u32 %v608, 16
      %v661 = vshll.u32 %v608, 16
      %v663 = vrot.slane %v661, 1
      %v664 = vor.u32 %v659, %v663
      %665 = vrot.lane.b32.xlu0 %v615, 40
      %v666 = vpop.permute.xlu0 %665
      %667 = vrot.lane.b32.xlu0 %v622, 40
      %v668 = vpop.permute.xlu0 %667
      %669 = vrot.lane.b32.xlu0 %v629, 40
      %v670 = vpop.permute.xlu0 %669
      %671 = vrot.lane.b32.xlu0 %v636, 40
      %v672 = vpop.permute.xlu0 %671
      %673 = vrot.lane.b32.xlu0 %v643, 40
      %v674 = vpop.permute.xlu0 %673
      %675 = vrot.lane.b32.xlu0 %v650, 40
      %v676 = vpop.permute.xlu0 %675
      %677 = vrot.lane.b32.xlu0 %v657, 40
      %v678 = vpop.permute.xlu0 %677
      %679 = vrot.lane.b32.xlu0 %v664, 40
      %v680 = vpop.permute.xlu0 %679
      %v689 = vunpack.c.l.b16 %v278
      %v690 = vunpack.c.l.b16 %v280
      %v691 = vunpack.c.l.b16 %v282
      %v692 = vunpack.c.l.b16 %v284
      %v693 = vunpack.c.l.b16 %v286
      %v694 = vunpack.c.l.b16 %v288
      %v695 = vunpack.c.l.b16 %v290
      %v696 = vunpack.c.l.b16 %v275
      %v697 = vpack.c.b16 %v689, %v689
      %v698 = vpack.c.b16 %v690, %v690
      %v699 = vpack.c.b16 %v691, %v691
      %v700 = vpack.c.b16 %v692, %v692
      %v701 = vpack.c.b16 %v693, %v693
      %v702 = vpack.c.b16 %v694, %v694
      %v703 = vpack.c.b16 %v695, %v695
      %v704 = vpack.c.b16 %v696, %v696
      %705 = vrot.lane.b32.xlu0 %v697, 48
      %v706 = vpop.permute.xlu0 %705
      %707 = vrot.lane.b32.xlu0 %v698, 48
      %v708 = vpop.permute.xlu0 %707
      %709 = vrot.lane.b32.xlu0 %v699, 48
      %v710 = vpop.permute.xlu0 %709
      %711 = vrot.lane.b32.xlu0 %v700, 48
      %v712 = vpop.permute.xlu0 %711
      %713 = vrot.lane.b32.xlu0 %v701, 48
      %v714 = vpop.permute.xlu0 %713
      %715 = vrot.lane.b32.xlu0 %v702, 48
      %v716 = vpop.permute.xlu0 %715
      %717 = vrot.lane.b32.xlu0 %v703, 48
      %v718 = vpop.permute.xlu0 %717
      %719 = vrot.lane.b32.xlu0 %v704, 48
      %v720 = vpop.permute.xlu0 %719
      %v729 = vunpack.c.l.b16 %v295
      %v730 = vunpack.c.l.b16 %v296
      %v731 = vunpack.c.l.b16 %v297
      %v732 = vunpack.c.l.b16 %v298
      %v733 = vunpack.c.l.b16 %v299
      %v734 = vunpack.c.l.b16 %v300
      %v735 = vunpack.c.l.b16 %v301
      %v736 = vunpack.c.l.b16 %v293
      %v737 = vpack.c.b16 %v729, %v729
      %v738 = vpack.c.b16 %v730, %v730
      %v739 = vpack.c.b16 %v731, %v731
      %v740 = vpack.c.b16 %v732, %v732
      %v741 = vpack.c.b16 %v733, %v733
      %v742 = vpack.c.b16 %v734, %v734
      %v743 = vpack.c.b16 %v735, %v735
      %v744 = vpack.c.b16 %v736, %v736
      %745 = vrot.lane.b32.xlu0 %v737, 56
      %v746 = vpop.permute.xlu0 %745
      %747 = vrot.lane.b32.xlu0 %v738, 56
      %v748 = vpop.permute.xlu0 %747
      %749 = vrot.lane.b32.xlu0 %v739, 56
      %v750 = vpop.permute.xlu0 %749
      %751 = vrot.lane.b32.xlu0 %v740, 56
      %v752 = vpop.permute.xlu0 %751
      %753 = vrot.lane.b32.xlu0 %v741, 56
      %v754 = vpop.permute.xlu0 %753
      %755 = vrot.lane.b32.xlu0 %v742, 56
      %v756 = vpop.permute.xlu0 %755
      %757 = vrot.lane.b32.xlu0 %v743, 56
      %v758 = vpop.permute.xlu0 %757
      %759 = vrot.lane.b32.xlu0 %v744, 56
      %v760 = vpop.permute.xlu0 %759
      %v769 = vunpack.c.l.b16 %v279
      %v770 = vunpack.c.l.b16 %v281
      %v771 = vunpack.c.l.b16 %v283
      %v772 = vunpack.c.l.b16 %v285
      %v773 = vunpack.c.l.b16 %v287
      %v774 = vunpack.c.l.b16 %v289
      %v775 = vunpack.c.l.b16 %v291
      %v776 = vunpack.c.l.b16 %v276
      %v777 = vpack.c.b16 %v769, %v689
      %v778 = vpack.c.b16 %v770, %v690
      %v779 = vpack.c.b16 %v771, %v691
      %v780 = vpack.c.b16 %v772, %v692
      %v781 = vpack.c.b16 %v773, %v693
      %v782 = vpack.c.b16 %v774, %v694
      %v783 = vpack.c.b16 %v775, %v695
      %v784 = vpack.c.b16 %v776, %v696
      %v786 = vshrl.u32 %v777, 16
      %v788 = vshll.u32 %v777, 16
      %v790 = vrot.slane %v788, 1
      %v791 = vor.u32 %v786, %v790
      %v793 = vshrl.u32 %v778, 16
      %v795 = vshll.u32 %v778, 16
      %v797 = vrot.slane %v795, 1
      %v798 = vor.u32 %v793, %v797
      %v800 = vshrl.u32 %v779, 16
      %v802 = vshll.u32 %v779, 16
      %v804 = vrot.slane %v802, 1
      %v805 = vor.u32 %v800, %v804
      %v807 = vshrl.u32 %v780, 16
      %v809 = vshll.u32 %v780, 16
      %v811 = vrot.slane %v809, 1
      %v812 = vor.u32 %v807, %v811
      %v814 = vshrl.u32 %v781, 16
      %v816 = vshll.u32 %v781, 16
      %v818 = vrot.slane %v816, 1
      %v819 = vor.u32 %v814, %v818
      %v821 = vshrl.u32 %v782, 16
      %v823 = vshll.u32 %v782, 16
      %v825 = vrot.slane %v823, 1
      %v826 = vor.u32 %v821, %v825
      %v828 = vshrl.u32 %v783, 16
      %v830 = vshll.u32 %v783, 16
      %v832 = vrot.slane %v830, 1
      %v833 = vor.u32 %v828, %v832
      %v835 = vshrl.u32 %v784, 16
      %v837 = vshll.u32 %v784, 16
      %v839 = vrot.slane %v837, 1
      %v840 = vor.u32 %v835, %v839
      %841 = vrot.lane.b32.xlu0 %v791, 64
      %v842 = vpop.permute.xlu0 %841
      %843 = vrot.lane.b32.xlu0 %v798, 64
      %v844 = vpop.permute.xlu0 %843
      %845 = vrot.lane.b32.xlu0 %v805, 64
      %v846 = vpop.permute.xlu0 %845
      %847 = vrot.lane.b32.xlu0 %v812, 64
      %v848 = vpop.permute.xlu0 %847
      %849 = vrot.lane.b32.xlu0 %v819, 64
      %v850 = vpop.permute.xlu0 %849
      %851 = vrot.lane.b32.xlu0 %v826, 64
      %v852 = vpop.permute.xlu0 %851
      %853 = vrot.lane.b32.xlu0 %v833, 64
      %v854 = vpop.permute.xlu0 %853
      %855 = vrot.lane.b32.xlu0 %v840, 64
      %v856 = vpop.permute.xlu0 %855
      %vm857 = vcmask 64512
      %v860 = vsel %vm857, %v302, %v378
      %v863 = vsel %vm857, %v303, %v380
      %v866 = vsel %vm857, %v304, %v382
      %v869 = vsel %vm857, %v305, %v384
      %v872 = vsel %vm857, %v306, %v386
      %v875 = vsel %vm857, %v307, %v388
      %v878 = vsel %vm857, %v308, %v390
      %v881 = vsel %vm857, %v309, %v392
      %vm882 = vcmask 130048
      %v884 = vsel %vm882, %v860, %v490
      %v886 = vsel %vm882, %v863, %v492
      %v888 = vsel %vm882, %v866, %v494
      %v890 = vsel %vm882, %v869, %v496
      %v892 = vsel %vm882, %v872, %v498
      %v894 = vsel %vm882, %v875, %v500
      %v896 = vsel %vm882, %v878, %v502
      %v898 = vsel %vm882, %v881, %v504
      %vm899 = vcmask 195584
      %v901 = vsel %vm899, %v884, %v530
      %v903 = vsel %vm899, %v886, %v532
      %v905 = vsel %vm899, %v888, %v534
      %v907 = vsel %vm899, %v890, %v536
      %v909 = vsel %vm899, %v892, %v538
      %v911 = vsel %vm899, %v894, %v540
      %v913 = vsel %vm899, %v896, %v542
      %v915 = vsel %vm899, %v898, %v544
      %vm916 = vcmask 261120
      %v918 = vsel %vm916, %v901, %v570
      %v920 = vsel %vm916, %v903, %v572
      %v922 = vsel %vm916, %v905, %v574
      %v924 = vsel %vm916, %v907, %v576
      %v926 = vsel %vm916, %v909, %v578
      %v928 = vsel %vm916, %v911, %v580
      %v930 = vsel %vm916, %v913, %v582
      %v932 = vsel %vm916, %v915, %v584
      %vm933 = vcmask 326656
      %v935 = vsel %vm933, %v918, %v666
      %v937 = vsel %vm933, %v920, %v668
      %v939 = vsel %vm933, %v922, %v670
      %v941 = vsel %vm933, %v924, %v672
      %v943 = vsel %vm933, %v926, %v674
      %v945 = vsel %vm933, %v928, %v676
      %v947 = vsel %vm933, %v930, %v678
      %v949 = vsel %vm933, %v932, %v680
      %vm950 = vcmask 392192
      %v952 = vsel %vm950, %v935, %v706
      %v954 = vsel %vm950, %v937, %v708
      %v956 = vsel %vm950, %v939, %v710
      %v958 = vsel %vm950, %v941, %v712
      %v960 = vsel %vm950, %v943, %v714
      %v962 = vsel %vm950, %v945, %v716
      %v964 = vsel %vm950, %v947, %v718
      %v966 = vsel %vm950, %v949, %v720
      %vm967 = vcmask 457728
      %v969 = vsel %vm967, %v952, %v746
      %v971 = vsel %vm967, %v954, %v748
      %v973 = vsel %vm967, %v956, %v750
      %v975 = vsel %vm967, %v958, %v752
      %v977 = vsel %vm967, %v960, %v754
      %v979 = vsel %vm967, %v962, %v756
      %v981 = vsel %vm967, %v964, %v758
      %v983 = vsel %vm967, %v966, %v760
      %vm984 = vcmask 523264
      %v986 = vsel %vm984, %v969, %v842
      %v988 = vsel %vm984, %v971, %v844
      %v990 = vsel %vm984, %v973, %v846
      %v992 = vsel %vm984, %v975, %v848
      %v994 = vsel %vm984, %v977, %v850
      %v996 = vsel %vm984, %v979, %v852
      %v998 = vsel %vm984, %v981, %v854
      %v1000 = vsel %vm984, %v983, %v856
      %v1001 = vld [vmem:[%s2] sm:$0xf]
      %v1002 = vld [vmem:[%s2 + $0x4] sm:$0xf]
      %v1003 = vld [vmem:[%s2 + $0x8] sm:$0xf]
      %v1004 = vld [vmem:[%s2 + $0xc] sm:$0xf]
      %v1005 = vld [vmem:[%s2 + $0x10] sm:$0xf]
      %v1006 = vld [vmem:[%s2 + $0x14] sm:$0xf]
      %v1007 = vld [vmem:[%s2 + $0x18] sm:$0xf]
      %v1008 = vld [vmem:[%s2 + $0x1c] sm:$0xf]
      %v1009 = vld [vmem:[%s2 + $0x20] sm:$0xf]
      %v1010 = vld [vmem:[%s3] sm:$0x1]
      %v1012 = vlaneseq
      %v1013 = vshrl.u32 %v1012, 7
      %v1014 = vsub.s32 0, %v1013
      %v1015 = vrot.slane %v1010, %v1014
      %v1025 = vunpack.c.l.b16 %v986
      %v1026 = vunpack.c.l.b16 %v988
      %v1027 = vunpack.c.l.b16 %v990
      %v1028 = vunpack.c.l.b16 %v992
      %v1029 = vunpack.c.l.b16 %v994
      %v1030 = vunpack.c.l.b16 %v996
      %v1031 = vunpack.c.l.b16 %v998
      %v1032 = vunpack.c.l.b16 %v1000
      %v1033 = vpack.c.b16 %v1026, %v1025
      %v1034 = vpack.c.b16 %v1028, %v1027
      %v1035 = vpack.c.b16 %v1030, %v1029
      %v1036 = vpack.c.b16 %v1032, %v1031
      %v1046 = vunpack.c.l.b16 %v1001
      %v1047 = vunpack.c.l.b16 %v1002
      %v1048 = vunpack.c.l.b16 %v1003
      %v1049 = vunpack.c.l.b16 %v1004
      %v1050 = vunpack.c.l.b16 %v1005
      %v1051 = vunpack.c.l.b16 %v1006
      %v1052 = vunpack.c.l.b16 %v1007
      %v1053 = vunpack.c.l.b16 %v1008
      %v1054 = vunpack.c.l.b16 %v1009
      %v1055 = vpack.c.b16 %v1047, %v1046
      %v1056 = vpack.c.b16 %v1049, %v1048
      %v1057 = vpack.c.b16 %v1051, %v1050
      %v1058 = vpack.c.b16 %v1053, %v1052
      %v1059 = vpack.c.b16 %v1054, %v1054
      %vm1064 = vcmask 588800
      %v1066 = vsel %vm1064, %v1033, 0
      %v1069 = vsel %vm1064, %v1034, 0
      %v1072 = vsel %vm1064, %v1035, 0
      %v1075 = vsel %vm1064, %v1036, 0
      %vm1077 = vcmask 1043456
      %v1079 = vsel %vm1077, %v1059, 0
      %1081 = vmatprep.subr.bf16.mxu0 0
      %1082 = vmatpush1.bf16.msra.mxu0 %v1055
      %1083 = vmatprep.subr.bf16.mxu0 0
      %1084 = vmatpush1.bf16.msra.mxu0 %v1056
      %1085 = vmatprep.subr.bf16.mxu0 0
      %1086 = vmatpush1.bf16.msra.mxu0 %v1057
      %1087 = vmatprep.subr.bf16.mxu0 0
      %1088 = vmatpush1.bf16.msra.mxu0 %v1058
      %1089 = vmatprep.subr.bf16.mxu0 0
      %1090 = vmatpush1.bf16.msra.mxu0 %v1079
      %1091 = vmatprep.subr.bf16.mxu0 0
      %1092 = vmatpush1.bf16.msra.mxu0 0
      %1093 = vmatprep.subr.bf16.mxu0 0
      %1094 = vmatpush1.bf16.msra.mxu0 0
      %1095 = vmatprep.subr.bf16.mxu0 0
      %1096 = vmatpush1.bf16.msra.mxu0 0
      %1097 = vmatprep.subr.bf16.mxu0 0
      %1098 = vmatpush1.bf16.msra.mxu0 0
      %1099 = vmatprep.subr.bf16.mxu0 0
      %1100 = vmatpush1.bf16.msra.mxu0 0
      %1101 = vmatprep.subr.bf16.mxu0 0
      %1102 = vmatpush1.bf16.msra.mxu0 0
      %1103 = vmatprep.subr.bf16.mxu0 0
      %1104 = vmatpush1.bf16.msra.mxu0 0
      %1105 = vmatprep.subr.bf16.mxu0 0
      %1106 = vmatpush1.bf16.msra.mxu0 0
      %1107 = vmatprep.subr.bf16.mxu0 0
      %1108 = vmatpush1.bf16.msra.mxu0 0
      %1109 = vmatprep.subr.bf16.mxu0 0
      %1110 = vmatpush1.bf16.msra.mxu0 0
      %1111 = vmatprep.subr.bf16.mxu0 0
      %1112 = vmatpush1.bf16.msra.mxu0 0
      %1113 = vmatprep.mubr.bf16.mxu0 0
      %1114 = vmatmul.mubr.bf16.gmra.mrb[0].mxu0 %v1066
      %v1115 = vpop.f32.mrb[0].mxu0
      %v1116 = vadd.f32 %v1015, %v1115
      %v1117 = vpop.f32.mrb[0].mxu0
      %v1118 = vpop.f32.mrb[0].mxu0
      %v1119 = vadd.f32 %v1015, %v1118
      %v1120 = vpop.f32.mrb[0].mxu0
      %1121 = vmatprep.mubr.bf16.mxu0 0
      %1122 = vmatmul.mubr.bf16.gmra.mrb[0].mxu0 %v1069
      %v1123 = vpop.f32.mrb[0].mxu0
      %v1124 = vadd.f32 %v1015, %v1123
      %v1125 = vpop.f32.mrb[0].mxu0
      %v1126 = vpop.f32.mrb[0].mxu0
      %v1127 = vadd.f32 %v1015, %v1126
      %v1128 = vpop.f32.mrb[0].mxu0
      %1129 = vmatprep.mubr.bf16.mxu0 0
      %1130 = vmatmul.mubr.bf16.gmra.mrb[0].mxu0 %v1072
      %v1131 = vpop.f32.mrb[0].mxu0
      %v1132 = vadd.f32 %v1015, %v1131
      %v1133 = vpop.f32.mrb[0].mxu0
      %v1134 = vpop.f32.mrb[0].mxu0
      %v1135 = vadd.f32 %v1015, %v1134
      %v1136 = vpop.f32.mrb[0].mxu0
      %1137 = vmatprep.mubr.bf16.mxu0 0
      %1138 = vmatmul.mubr.bf16.gmra.mrb[0].mxu0 %v1075
      %v1139 = vpop.f32.mrb[0].mxu0
      %v1140 = vadd.f32 %v1015, %v1139
      %v1141 = vpop.f32.mrb[0].mxu0
      %v1142 = vpop.f32.mrb[0].mxu0
      %v1143 = vadd.f32 %v1015, %v1142
      %v1144 = vpop.f32.mrb[0].mxu0
      %1145 = vdwg.mxu0
      %1146 = vst.msk [vmem:[%s272] sm:$0xff] %vm857, %v1116
      %1147 = vst.msk [vmem:[%s272 + $0x8] sm:$0xff] %vm857, %v1119
      %1148 = vst.msk [vmem:[%s272 + $0x10] sm:$0xff] %vm857, %v1124
      %1149 = vst.msk [vmem:[%s272 + $0x18] sm:$0xff] %vm857, %v1127
      %1150 = vst.msk [vmem:[%s272 + $0x20] sm:$0xff] %vm857, %v1132
      %1151 = vst.msk [vmem:[%s272 + $0x28] sm:$0xff] %vm857, %v1135
      %1152 = vst.msk [vmem:[%s272 + $0x30] sm:$0xff] %vm857, %v1140
      %1153 = vst.msk [vmem:[%s272 + $0x38] sm:$0xff] %vm857, %v1143
      %s1154 = smul.u32 8, %s20
      %p1155 = scmp.lt.s32.totalorder %s19, 1
      %s1156 = scalar_select %p1155, %s19, 1
      %p1157 = scmp.lt.s32.totalorder %s1154, 7
      %s1158 = scalar_select %p1157, %s1154, 7
      %s1159 = smul.addr %s1156, 8
      %s1160 = sadd.s32 %s1158, %s1159
      %s1161 = smul.addr %s1160, 8
      %s1162 = scalar_lea.vmem %s4, %s1161
      // Predicated region
      $region37: #{downsample.1} parent=35 // pred_check
        %p1163 = pneg %p145
      $region38: #{downsample.1} parent=35 // pred_check_branch
        %1165 = sbr.rel (%p1163) target = $region40
      $region39: #{downsample.1} parent=35 // pred_region
        %s1166 = smul.u32 8, %s20
      $region40: #{downsample.1} parent=35 // pred_fallthru
        _
    $region36: #{downsample.1} parent=5 // pred_fallthru
      _
    %p1167 = scmp.le.s32.totalorder 2, %s10
    // Predicated region
    $region41: #{downsample.1} parent=5 // pred_check
      %p1168 = pneg %p1167
    $region42: #{downsample.1} parent=5 // pred_check_branch
      %1170 = sbr.rel (%p1168) target = $region44
    $region43: #{downsample.1} parent=5 // pred_region
      %s1171 = ssub.s32 %s10, 2
      // Predicated region
      $region45: #{downsample.1} parent=43 // pred_check
        %p1172 = pneg %p151
      $region46: #{downsample.1} parent=43 // pred_check_branch
        %1174 = sbr.rel (%p1172) target = $region48
      $region47: #{downsample.1} parent=43 // pred_region
        %s1175 = smul.u32 8, %s22
        %p1176 = scmp.lt.s32.totalorder %s21, 1
        %s1177 = scalar_select %p1176, %s21, 1
        %p1178 = scmp.lt.s32.totalorder %s1175, 7
        %s1179 = scalar_select %p1178, %s1175, 7
        %s1180 = smul.addr %s1177, 8
        %s1181 = sadd.s32 %s1179, %s1180
        %s1182 = smul.addr %s1181, 8
        %s1183 = scalar_lea.vmem %s4, %s1182
      $region48: #{downsample.1} parent=43 // pred_fallthru
        _
    $region44: #{downsample.1} parent=5 // pred_fallthru
      _
  $region6: #{downsample.1} parent=0 // loop_footer
    %s14 = sadd.s32 1, %s10
  $region7: #{downsample.1} parent=0 // loop_footer_branch
    %9 = sbr.rel target = $region3
  $region8: #{downsample.1} parent=0 // loop_exit
    _

</llo_original>
